<compile_context>
chip_gen: v6e
topology: v6e:2x2x1
jax: 0.10.0
libtpu: 0.0.40
codegen_flags: <defaults>
</compile_context>

<pallas_src>
import math
from functools import partial

import jax
import jax.numpy as jnp
from jax.experimental import pallas as pl
from jax.experimental.pallas import tpu as pltpu


def _hardswish(x):
    # PyTorch Hardswish: x * relu6(x + 3) / 6   (kept in f32 on the VPU)
    return x * jnp.clip(x + 3.0, 0.0, 6.0) * (1.0 / 6.0)


def _round_up(n, m):
    return ((n + m - 1) // m) * m


def densenet_kernel(x_ref, w1t_ref, b1_ref, w2t_top_ref, w2t_bot_ref, b2_ref,
                    out_ref):
    # x tile: (TB, D) f32 — keep exact f32 values for the passthrough lanes of
    # the output; cast to bf16 only as the MXU operand.
    x = x_ref[...]
    x_bf = x.astype(jnp.bfloat16)

    # dense1: Linear(D, D) + Hardswish   (bf16 x bf16 -> f32 accumulate)
    h1 = jnp.dot(x_bf, w1t_ref[...],
                 preferred_element_type=jnp.float32) + b1_ref[...]
    h1 = _hardswish(h1)
    h1_bf = h1.astype(jnp.bfloat16)   # cast AFTER the f32 activation

    # dense2 on x2 = cat(x, h1): split-W2 trick — two matmuls against the
    # pre-split halves of W2^T (Ref tiles used directly, no value slicing).
    h2 = (jnp.dot(x_bf, w2t_top_ref[...], preferred_element_type=jnp.float32)
          + jnp.dot(h1_bf, w2t_bot_ref[...], preferred_element_type=jnp.float32)
          + b2_ref[...])
    h2 = _hardswish(h2)

    # out = cat(x2, dense2(x2)) = cat(x, h1, h2): single lane-dense store.
    out_ref[...] = jnp.concatenate([x, h1, h2], axis=1).astype(out_ref.dtype)


def prepare_params(w1, b1, w2, b2):
    """One-time parameter prep (outside the per-step path): transpose torch
    (out, in) weights to (in, out), cast to bf16, split W2^T along K."""
    D = w1.shape[0]
    w1t = jnp.asarray(w1.T, jnp.bfloat16)                  # (D, D)
    w2t = jnp.asarray(w2.T)                                # (2D, 2D)
    w2t_top = w2t[:D, :].astype(jnp.bfloat16)              # (D, 2D)
    w2t_bot = w2t[D:, :].astype(jnp.bfloat16)              # (D, 2D)
    b1_2d = jnp.asarray(b1, jnp.float32).reshape(1, D)
    b2_2d = jnp.asarray(b2, jnp.float32).reshape(1, 2 * D)
    return w1t, b1_2d, w2t_top, w2t_bot, b2_2d


@partial(jax.jit, static_argnames=("block_b", "out_dtype"))
def densenet_forward(x, w1t, b1_2d, w2t_top, w2t_bot, b2_2d, *,
                     block_b=2048, out_dtype=None):
    """x: (B, D) float32. Prepared params from prepare_params().

    block_b: batch tile size (rows per grid step). Forced to a multiple of 8.
             2048 by default — large enough to approach the HBM roofline for
             this memory-bound kernel, small enough (a few MiB of VMEM at
             D=32) to fit every TPU generation with headroom.  On v7x pick a
             block_b that yields an even number of grid steps for best
             TensorCore balance.
    out_dtype: output dtype; None -> same as x (f32, matches PyTorch).
               Pass jnp.bfloat16 to halve output writeback traffic.
    """
    B, D = x.shape
    out_dtype = x.dtype if out_dtype is None else jnp.dtype(out_dtype)

    # Batch tile: multiple of 8 (f32 sublane tiling rule on the x/out specs).
    block_b = max(8, (int(block_b) // 8) * 8)
    TB = min(block_b, _round_up(B, 8))

    # No host-side padding: Pallas handles the ragged last block (out-of-range
    # rows are never stored; rows are independent so they cannot corrupt
    # valid rows).
    grid = (pl.cdiv(B, TB),)

    # VMEM budget: double-buffered x/out tiles + resident weights + headroom
    # for f32 intermediates.  Cap at 60 MiB (v7x has 64 MiB physical per TC);
    # floor at 32 MiB (v5e default scoped VMEM is only 16 MiB).
    x_tile_bytes = TB * D * 4
    out_tile_bytes = TB * 4 * D * out_dtype.itemsize
    w_bytes = (D * D + 2 * D * 2 * D) * 2 + (D + 2 * D) * 4
    interm_bytes = TB * 4 * D * 4 * 2          # h1/h2/concat f32 temporaries
    need = 2 * (x_tile_bytes + out_tile_bytes) + w_bytes + interm_bytes
    vmem_limit = int(min(max(2 * need, 32 * 1024 * 1024), 60 * 1024 * 1024))

    resident = lambda shape: pl.BlockSpec(shape, lambda i: (0, 0))

    out = pl.pallas_call(
        densenet_kernel,
        out_shape=jax.ShapeDtypeStruct((B, 4 * D), out_dtype),
        grid=grid,
        in_specs=[
            pl.BlockSpec((TB, D), lambda i: (i, 0)),   # x: tiled over batch
            resident((D, D)),                          # W1^T (bf16)
            resident((1, D)),                          # b1
            resident((D, 2 * D)),                      # W2^T top half (bf16)
            resident((D, 2 * D)),                      # W2^T bottom half (bf16)
            resident((1, 2 * D)),                      # b2
        ],
        out_specs=pl.BlockSpec((TB, 4 * D), lambda i: (i, 0)),
        compiler_params=pltpu.CompilerParams(
            dimension_semantics=("parallel",),         # 2 TCs on v7x
            vmem_limit_bytes=vmem_limit),
    )(x, w1t, b1_2d, w2t_top, w2t_bot, b2_2d)

    return out


def _torch_linear_init(key, fan_out, fan_in):
    """Matches nn.Linear default init (uniform +/- 1/sqrt(fan_in))."""
    kw, kb = jax.random.split(key)
    bound = 1.0 / math.sqrt(fan_in)
    w = jax.random.uniform(kw, (fan_out, fan_in), jnp.float32, -bound, bound)
    b = jax.random.uniform(kb, (fan_out,), jnp.float32, -bound, bound)
    return w, b


def _reference_f32(x, w1, b1, w2, b2):
    """Exact PyTorch-module math in f32 (semantic reference)."""
    h1 = _hardswish(x @ w1.T + b1)
    x2 = jnp.concatenate([x, h1], axis=1)
    h2 = _hardswish(x2 @ w2.T + b2)
    return jnp.concatenate([x2, h2], axis=1)


def _reference_mirrored(x, w1t, b1_2d, w2t_top, w2t_bot, b2_2d):
    """Same math with the kernel's bf16-operand / f32-accumulate precision."""
    x_bf = x.astype(jnp.bfloat16)
    h1 = _hardswish(
        jnp.dot(x_bf, w1t, preferred_element_type=jnp.float32) + b1_2d)
    h1_bf = h1.astype(jnp.bfloat16)
    h2 = _hardswish(
        jnp.dot(x_bf, w2t_top, preferred_element_type=jnp.float32)
        + jnp.dot(h1_bf, w2t_bot, preferred_element_type=jnp.float32)
        + b2_2d)
    return jnp.concatenate([x, h1, h2], axis=1)


if __name__ == "__main__":
    lay_dim = 32      # -> out_dim = 128 (one full lane-width output slab)
    batch = 200       # deliberately NOT a multiple of the small test tile

    key = jax.random.PRNGKey(0)
    kx, k1, k2 = jax.random.split(key, 3)

    x = jax.random.normal(kx, (batch, lay_dim), jnp.float32)
    w1, b1 = _torch_linear_init(k1, lay_dim, lay_dim)
    w2, b2 = _torch_linear_init(k2, 2 * lay_dim, 2 * lay_dim)

    params = prepare_params(w1, b1, w2, b2)

    ref_m = _reference_mirrored(x, *params)
    ref_f32 = _reference_f32(x, w1, b1, w2, b2)

    # 1) Default (large-tile) path: single grid step for this small batch.
    out = jax.block_until_ready(densenet_forward(x, *params))
    assert out.shape == (batch, 4 * lay_dim)
    assert out.dtype == x.dtype
    assert jnp.allclose(out, ref_m, atol=1e-4, rtol=1e-4), \
        "mismatch vs precision-mirrored reference (default tile)"
    assert jnp.allclose(out, ref_f32, atol=1e-1, rtol=1e-1), \
        "mismatch vs f32 reference beyond bf16 quantization bound"

    # 2) Multi-step grid with a ragged last block (200 = 3*64 + 8): exercises
    #    the no-pad / masked-last-block path.
    out_small = jax.block_until_ready(densenet_forward(x, *params, block_b=64))
    assert jnp.allclose(out_small, ref_m, atol=1e-4, rtol=1e-4), \
        "mismatch vs precision-mirrored reference (ragged multi-step grid)"

    # 3) Optional bf16 output (bandwidth saver), gated behind out_dtype flag.
    out_bf = jax.block_until_ready(
        densenet_forward(x, *params, out_dtype=jnp.bfloat16))
    assert out_bf.dtype == jnp.bfloat16
    assert jnp.allclose(out_bf.astype(jnp.float32), ref_m,
                        atol=5e-2, rtol=5e-2), \
        "mismatch vs reference beyond bf16 output quantization bound"

    print("KERNEL_OK")
</pallas_src>

<mosaic_0001>
module attributes {stable_mosaic.version = 11 : i64} {
  func.func @densenet_kernel(%arg0: i32, %arg1: memref<200x32xf32, #tpu.memory_space<vmem>>, %arg2: memref<32x32xbf16, #tpu.memory_space<vmem>>, %arg3: memref<1x32xf32, #tpu.memory_space<vmem>>, %arg4: memref<32x64xbf16, #tpu.memory_space<vmem>>, %arg5: memref<32x64xbf16, #tpu.memory_space<vmem>>, %arg6: memref<1x64xf32, #tpu.memory_space<vmem>>, %arg7: memref<200x128xf32, #tpu.memory_space<vmem>>) attributes {dimension_semantics = [#tpu.dimension_semantics<parallel>], iteration_bounds = array<i64: 1>, scalar_prefetch = 0 : i64, scratch_operands = 0 : i64, tpu.core_type = #tpu.core_type<tc>, window_params = [{transform_indices = @transform_0, window_bounds = array<i64: 200, 32>}, {pipeline_mode = #tpu.pipeline_mode<synchronous>, transform_indices = @transform_1, window_bounds = array<i64: 32, 32>}, {pipeline_mode = #tpu.pipeline_mode<synchronous>, transform_indices = @transform_2, window_bounds = array<i64: 1, 32>}, {pipeline_mode = #tpu.pipeline_mode<synchronous>, transform_indices = @transform_3, window_bounds = array<i64: 32, 64>}, {pipeline_mode = #tpu.pipeline_mode<synchronous>, transform_indices = @transform_4, window_bounds = array<i64: 32, 64>}, {pipeline_mode = #tpu.pipeline_mode<synchronous>, transform_indices = @transform_5, window_bounds = array<i64: 1, 64>}, {transform_indices = @transform_6, window_bounds = array<i64: 200, 128>}]} {
    %c0 = arith.constant 0 : index
    %c0_0 = arith.constant 0 : index
    %0 = vector.load %arg1[%c0, %c0_0] : memref<200x32xf32, #tpu.memory_space<vmem>>, vector<200x32xf32>
    %1 = arith.truncf %0 : vector<200x32xf32> to vector<200x32xbf16>
    %c0_1 = arith.constant 0 : index
    %c0_2 = arith.constant 0 : index
    %2 = vector.load %arg2[%c0_1, %c0_2] : memref<32x32xbf16, #tpu.memory_space<vmem>>, vector<32x32xbf16>
    %cst = arith.constant dense<0.000000e+00> : vector<200x32xf32>
    %3 = tpu.matmul %1, %2, %cst {dimension_numbers = #tpu.dot_dimension_numbers<[1], [0], [0], [1], [0, 0, 1, 1], [], []>} : vector<200x32xbf16>, vector<32x32xbf16>, vector<200x32xf32> -> vector<200x32xf32>
    %c0_3 = arith.constant 0 : index
    %c0_4 = arith.constant 0 : index
    %4 = vector.load %arg3[%c0_3, %c0_4] : memref<1x32xf32, #tpu.memory_space<vmem>>, vector<1x32xf32>
    %5 = vector.broadcast %4 : vector<1x32xf32> to vector<200x32xf32>
    %6 = arith.addf %3, %5 : vector<200x32xf32>
    %cst_5 = arith.constant 3.000000e+00 : f32
    %7 = vector.broadcast %cst_5 : f32 to vector<200x32xf32>
    %8 = arith.addf %6, %7 : vector<200x32xf32>
    %cst_6 = arith.constant 0.000000e+00 : f32
    %cst_7 = arith.constant 6.000000e+00 : f32
    %9 = vector.broadcast %cst_6 : f32 to vector<200x32xf32>
    %10 = arith.maximumf %9, %8 : vector<200x32xf32>
    %11 = vector.broadcast %cst_7 : f32 to vector<200x32xf32>
    %12 = arith.minimumf %11, %10 : vector<200x32xf32>
    %13 = arith.mulf %6, %12 : vector<200x32xf32>
    %cst_8 = arith.constant 0.166666672 : f32
    %14 = vector.broadcast %cst_8 : f32 to vector<200x32xf32>
    %15 = arith.mulf %13, %14 : vector<200x32xf32>
    %16 = arith.truncf %15 : vector<200x32xf32> to vector<200x32xbf16>
    %c0_9 = arith.constant 0 : index
    %c0_10 = arith.constant 0 : index
    %17 = vector.load %arg4[%c0_9, %c0_10] : memref<32x64xbf16, #tpu.memory_space<vmem>>, vector<32x64xbf16>
    %cst_11 = arith.constant dense<0.000000e+00> : vector<200x64xf32>
    %18 = tpu.matmul %1, %17, %cst_11 {dimension_numbers = #tpu.dot_dimension_numbers<[1], [0], [0], [1], [0, 0, 1, 1], [], []>} : vector<200x32xbf16>, vector<32x64xbf16>, vector<200x64xf32> -> vector<200x64xf32>
    %c0_12 = arith.constant 0 : index
    %c0_13 = arith.constant 0 : index
    %19 = vector.load %arg5[%c0_12, %c0_13] : memref<32x64xbf16, #tpu.memory_space<vmem>>, vector<32x64xbf16>
    %cst_14 = arith.constant dense<0.000000e+00> : vector<200x64xf32>
    %20 = tpu.matmul %16, %19, %cst_14 {dimension_numbers = #tpu.dot_dimension_numbers<[1], [0], [0], [1], [0, 0, 1, 1], [], []>} : vector<200x32xbf16>, vector<32x64xbf16>, vector<200x64xf32> -> vector<200x64xf32>
    %21 = arith.addf %18, %20 : vector<200x64xf32>
    %c0_15 = arith.constant 0 : index
    %c0_16 = arith.constant 0 : index
    %22 = vector.load %arg6[%c0_15, %c0_16] : memref<1x64xf32, #tpu.memory_space<vmem>>, vector<1x64xf32>
    %23 = vector.broadcast %22 : vector<1x64xf32> to vector<200x64xf32>
    %24 = arith.addf %21, %23 : vector<200x64xf32>
    %cst_17 = arith.constant 3.000000e+00 : f32
    %25 = vector.broadcast %cst_17 : f32 to vector<200x64xf32>
    %26 = arith.addf %24, %25 : vector<200x64xf32>
    %cst_18 = arith.constant 0.000000e+00 : f32
    %cst_19 = arith.constant 6.000000e+00 : f32
    %27 = vector.broadcast %cst_18 : f32 to vector<200x64xf32>
    %28 = arith.maximumf %27, %26 : vector<200x64xf32>
    %29 = vector.broadcast %cst_19 : f32 to vector<200x64xf32>
    %30 = arith.minimumf %29, %28 : vector<200x64xf32>
    %31 = arith.mulf %24, %30 : vector<200x64xf32>
    %cst_20 = arith.constant 0.166666672 : f32
    %32 = vector.broadcast %cst_20 : f32 to vector<200x64xf32>
    %33 = arith.mulf %31, %32 : vector<200x64xf32>
    %34 = tpu.concatenate %0, %15, %33 in 1 : vector<200x32xf32>, vector<200x32xf32>, vector<200x64xf32> -> vector<200x128xf32>
    %c0_21 = arith.constant 0 : index
    %c0_22 = arith.constant 0 : index
    %35 = vector.load %arg7[%c0_21, %c0_22] : memref<200x128xf32, #tpu.memory_space<vmem>>, vector<200x128xf32>
    tpu.vector_store %arg7[%c0_21, %c0_22], %34 {strides = array<i32>} : memref<200x128xf32, #tpu.memory_space<vmem>>, vector<200x128xf32>,
    return
  }
  func.func @transform_0(%arg0: i32) -> (i32, i32) {
    %c0_i32 = arith.constant 0 : i32
    %c0_i32_0 = arith.constant 0 : i32
    return %arg0, %c0_i32 : i32, i32
  }
  func.func @transform_1(%arg0: i32) -> (i32, i32) {
    %c0_i32 = arith.constant 0 : i32
    %c0_i32_0 = arith.constant 0 : i32
    %c0_i32_1 = arith.constant 0 : i32
    return %c0_i32, %c0_i32_0 : i32, i32
  }
  func.func @transform_2(%arg0: i32) -> (i32, i32) {
    %c0_i32 = arith.constant 0 : i32
    %c0_i32_0 = arith.constant 0 : i32
    %c0_i32_1 = arith.constant 0 : i32
    return %c0_i32, %c0_i32_0 : i32, i32
  }
  func.func @transform_3(%arg0: i32) -> (i32, i32) {
    %c0_i32 = arith.constant 0 : i32
    %c0_i32_0 = arith.constant 0 : i32
    %c0_i32_1 = arith.constant 0 : i32
    return %c0_i32, %c0_i32_0 : i32, i32
  }
  func.func @transform_4(%arg0: i32) -> (i32, i32) {
    %c0_i32 = arith.constant 0 : i32
    %c0_i32_0 = arith.constant 0 : i32
    %c0_i32_1 = arith.constant 0 : i32
    return %c0_i32, %c0_i32_0 : i32, i32
  }
  func.func @transform_5(%arg0: i32) -> (i32, i32) {
    %c0_i32 = arith.constant 0 : i32
    %c0_i32_0 = arith.constant 0 : i32
    %c0_i32_1 = arith.constant 0 : i32
    return %c0_i32, %c0_i32_0 : i32, i32
  }
  func.func @transform_6(%arg0: i32) -> (i32, i32) {
    %c0_i32 = arith.constant 0 : i32
    %c0_i32_0 = arith.constant 0 : i32
    return %arg0, %c0_i32 : i32, i32
  }
}

</mosaic_0001>

<llo_original>
// kernel: densenet_forward.1
$region0: #{densenet_forward.1}
  #allocation0 [shape = 'u32[]', space=smem, size = 0x4, offset = 0x4, fixed_abs, tag = 'smem constant byte address 0x4 - core index']
  #allocation1 [shape = 'u32[144,128]{1,0:T(1,128)}', space=vmem, size = 0x12000, scoped, tag = 'internal scratch']
  %s0 = inlined_call_operand.vmem [shape: f32[200,32], index: 0, kind: input, shape index: {}]
  %s1 = inlined_call_operand.vmem [shape: bf16[32,32], index: 1, kind: input, shape index: {}]
  %s2 = inlined_call_operand.vmem [shape: f32[1,32], index: 2, kind: input, shape index: {}]
  %s3 = inlined_call_operand.vmem [shape: bf16[32,64], index: 3, kind: input, shape index: {}]
  %s4 = inlined_call_operand.vmem [shape: bf16[32,64], index: 4, kind: input, shape index: {}]
  %s5 = inlined_call_operand.vmem [shape: f32[1,64], index: 5, kind: input, shape index: {}]
  %s6 = inlined_call_operand.hbm [shape: f32[200,128], index: 6, kind: output, shape index: {}]
  %s7 = sld [smem:[#allocation0]]
  $region34: #{densenet_forward.1} parent=0
    _
  %s9 = ssub.s32 1, %s7
  %s10 = scalar_select 0, %s9, %s7
  $region1: #{densenet_forward.1} parent=0
    #allocation2 [shape = 'u8[102400]{0}', space=vmem, size = 0x19000, scoped, tag = 'output window, operand 0, single buffered']
    #allocation3 [shape = 's32[1]{0}', space=sflag, size = 0x4, scoped, tag = 'scoped memory for densenet_forward.1']
    %11 = vsyncpa [#allocation3], 0
    // Predicated region
    $region2: #{densenet_forward.1} parent=1 // pred_check
      _
    $region3: #{densenet_forward.1} parent=1 // pred_check_branch
      %13 = sbr.rel (0) target = $region5
    $region4: #{densenet_forward.1} parent=1 // pred_region
      _
    $region5: #{densenet_forward.1} parent=1 // pred_fallthru
      _
    // Predicated region
    $region6: #{densenet_forward.1} parent=1 // pred_check
      _
    $region7: #{densenet_forward.1} parent=1 // pred_check_branch
      %15 = sbr.rel (0) target = $region9
    $region8: #{densenet_forward.1} parent=1 // pred_region
      _
    $region9: #{densenet_forward.1} parent=1 // pred_fallthru
      _
    // Predicated region
    $region10: #{densenet_forward.1} parent=1 // pred_check
      _
    $region11: #{densenet_forward.1} parent=1 // pred_check_branch
      %17 = sbr.rel (0) target = $region13
    $region12: #{densenet_forward.1} parent=1 // pred_region
      _
    $region13: #{densenet_forward.1} parent=1 // pred_fallthru
      _
    // Predicated region
    $region14: #{densenet_forward.1} parent=1 // pred_check
      _
    $region15: #{densenet_forward.1} parent=1 // pred_check_branch
      %19 = sbr.rel (0) target = $region17
    $region16: #{densenet_forward.1} parent=1 // pred_region
      _
    $region17: #{densenet_forward.1} parent=1 // pred_fallthru
      _
    // Predicated region
    $region18: #{densenet_forward.1} parent=1 // pred_check
      _
    $region19: #{densenet_forward.1} parent=1 // pred_check_branch
      %21 = sbr.rel (0) target = $region21
    $region20: #{densenet_forward.1} parent=1 // pred_region
      _
    $region21: #{densenet_forward.1} parent=1 // pred_fallthru
      _
    // Predicated region
    $region22: #{densenet_forward.1} parent=1 // pred_check
      _
    $region23: #{densenet_forward.1} parent=1 // pred_check_branch
      %23 = sbr.rel (0) target = $region25
    $region24: #{densenet_forward.1} parent=1 // pred_region
      _
    $region25: #{densenet_forward.1} parent=1 // pred_fallthru
      _
    %v25 = vld [vmem:[%s0] sm:$0xff]
    %v26 = vld [vmem:[%s0 + $0x8] sm:$0xff]
    %v27 = vld [vmem:[%s0 + $0x10] sm:$0xff]
    %v28 = vld [vmem:[%s0 + $0x18] sm:$0xff]
    %v29 = vld [vmem:[%s0 + $0x20] sm:$0xff]
    %v30 = vld [vmem:[%s0 + $0x28] sm:$0xff]
    %v31 = vld [vmem:[%s0 + $0x30] sm:$0xff]
    %v32 = vld [vmem:[%s0 + $0x38] sm:$0xff]
    %v33 = vld [vmem:[%s0 + $0x40] sm:$0xff]
    %v34 = vld [vmem:[%s0 + $0x48] sm:$0xff]
    %v35 = vld [vmem:[%s0 + $0x50] sm:$0xff]
    %v36 = vld [vmem:[%s0 + $0x58] sm:$0xff]
    %v37 = vld [vmem:[%s0 + $0x60] sm:$0xff]
    %v38 = vld [vmem:[%s0 + $0x68] sm:$0xff]
    %v39 = vld [vmem:[%s0 + $0x70] sm:$0xff]
    %v40 = vld [vmem:[%s0 + $0x78] sm:$0xff]
    %v41 = vld [vmem:[%s0 + $0x80] sm:$0xff]
    %v42 = vld [vmem:[%s0 + $0x88] sm:$0xff]
    %v43 = vld [vmem:[%s0 + $0x90] sm:$0xff]
    %v44 = vld [vmem:[%s0 + $0x98] sm:$0xff]
    %v45 = vld [vmem:[%s0 + $0xa0] sm:$0xff]
    %v46 = vld [vmem:[%s0 + $0xa8] sm:$0xff]
    %v47 = vld [vmem:[%s0 + $0xb0] sm:$0xff]
    %v48 = vld [vmem:[%s0 + $0xb8] sm:$0xff]
    %v49 = vld [vmem:[%s0 + $0xc0] sm:$0xff]
    %v50 = vpack.c.bf16 %v26, %v25
    %v51 = vpack.c.bf16 %v28, %v27
    %v52 = vpack.c.bf16 %v30, %v29
    %v53 = vpack.c.bf16 %v32, %v31
    %v54 = vpack.c.bf16 %v34, %v33
    %v55 = vpack.c.bf16 %v36, %v35
    %v56 = vpack.c.bf16 %v38, %v37
    %v57 = vpack.c.bf16 %v40, %v39
    %v58 = vpack.c.bf16 %v42, %v41
    %v59 = vpack.c.bf16 %v44, %v43
    %v60 = vpack.c.bf16 %v46, %v45
    %v61 = vpack.c.bf16 %v48, %v47
    %v62 = vpack.c.bf16 %v49, %v49
    %v63 = vld [vmem:[%s1] sm:$0xf]
    %v64 = vld [vmem:[%s1 + $0x4] sm:$0xf]
    %v65 = vld [vmem:[%s1 + $0x8] sm:$0xf]
    %v66 = vld [vmem:[%s1 + $0xc] sm:$0xf]
    %v67 = vld [vmem:[%s2] sm:$0x1]
    %v69 = vlaneseq
    %v70 = vshrl.u32 %v69, 7
    %v71 = vsub.s32 0, %v70
    %v72 = vrot.slane %v67, %v71
    %v78 = vunpack.c.l.b16 %v63
    %v79 = vunpack.c.l.b16 %v64
    %v80 = vunpack.c.l.b16 %v65
    %v81 = vunpack.c.l.b16 %v66
    %v82 = vpack.c.b16 %v79, %v78
    %v83 = vpack.c.b16 %v81, %v80
    %vm86 = vcmask 261120
    %v88 = vsel %vm86, %v50, 0
    %v91 = vsel %vm86, %v51, 0
    %v94 = vsel %vm86, %v52, 0
    %v97 = vsel %vm86, %v53, 0
    %v100 = vsel %vm86, %v54, 0
    %v103 = vsel %vm86, %v55, 0
    %v106 = vsel %vm86, %v56, 0
    %v109 = vsel %vm86, %v57, 0
    %v112 = vsel %vm86, %v58, 0
    %v115 = vsel %vm86, %v59, 0
    %v118 = vsel %vm86, %v60, 0
    %v121 = vsel %vm86, %v61, 0
    %v124 = vsel %vm86, %v62, 0
    %126 = vmatprep.subr.bf16.mxu0 0
    %127 = vmatpush1.bf16.msra.mxu0 0
    %128 = vmatprep.subr.bf16.mxu0 0
    %129 = vmatpush1.bf16.msra.mxu0 0
    %130 = vmatprep.subr.bf16.mxu0 0
    %131 = vmatpush1.bf16.msra.mxu0 0
    %132 = vmatprep.subr.bf16.mxu0 0
    %133 = vmatpush1.bf16.msra.mxu0 0
    %134 = vmatprep.subr.bf16.mxu0 0
    %135 = vmatpush1.bf16.msra.mxu0 0
    %136 = vmatprep.subr.bf16.mxu0 0
    %137 = vmatpush1.bf16.msra.mxu0 0
    %138 = vmatprep.subr.bf16.mxu0 0
    %139 = vmatpush1.bf16.msra.mxu0 %v83
    %140 = vmatprep.subr.bf16.mxu0 0
    %141 = vmatpush1.bf16.msra.mxu0 %v82
    %142 = vmatprep.subr.bf16.mxu0 0
    %143 = vmatpush2.bf16.msra.mxu0 0
    %144 = vmatprep.subr.bf16.mxu0 0
    %145 = vmatpush2.bf16.msra.mxu0 0
    %146 = vmatprep.subr.bf16.mxu0 0
    %147 = vmatpush2.bf16.msra.mxu0 0
    %148 = vmatprep.subr.bf16.mxu0 0
    %149 = vmatpush2.bf16.msra.mxu0 0
    %150 = vmatprep.subr.bf16.mxu0 0
    %151 = vmatpush2.bf16.msra.mxu0 0
    %152 = vmatprep.subr.bf16.mxu0 0
    %153 = vmatpush2.bf16.msra.mxu0 0
    %154 = vmatprep.subr.bf16.mxu0 0
    %155 = vmatpush2.bf16.msra.mxu0 0
    %156 = vmatprep.subr.bf16.mxu0 0
    %157 = vmatpush2.bf16.msra.mxu0 0
    %158 = vmatprep.mubr.bf16.mxu0 0
    %159 = vmatmul.mubr.bf16.gmra.mxu0 %v88
    %v160 = vpop.f32.mrf.mxu0
    %v161 = vadd.f32 %v72, %v160
    %v162 = vpop.f32.mrf.mxu0
    %v163 = vpop.f32.mrf.mxu0
    %v164 = vadd.f32 %v72, %v163
    %v165 = vpop.f32.mrf.mxu0
    %166 = vmatprep.mubr.bf16.mxu0 0
    %167 = vmatmul.mubr.bf16.gmra.mxu0 %v91
    %v168 = vpop.f32.mrf.mxu0
    %v169 = vadd.f32 %v72, %v168
    %v170 = vpop.f32.mrf.mxu0
    %v171 = vpop.f32.mrf.mxu0
    %v172 = vadd.f32 %v72, %v171
    %v173 = vpop.f32.mrf.mxu0
    %174 = vmatprep.mubr.bf16.mxu0 0
    %175 = vmatmul.mubr.bf16.gmra.mxu0 %v94
    %v176 = vpop.f32.mrf.mxu0
    %v177 = vadd.f32 %v72, %v176
    %v178 = vpop.f32.mrf.mxu0
    %v179 = vpop.f32.mrf.mxu0
    %v180 = vadd.f32 %v72, %v179
    %v181 = vpop.f32.mrf.mxu0
    %182 = vmatprep.mubr.bf16.mxu0 0
    %183 = vmatmul.mubr.bf16.gmra.mxu0 %v97
    %v184 = vpop.f32.mrf.mxu0
    %v185 = vadd.f32 %v72, %v184
    %v186 = vpop.f32.mrf.mxu0
    %v187 = vpop.f32.mrf.mxu0
    %v188 = vadd.f32 %v72, %v187
    %v189 = vpop.f32.mrf.mxu0
    %190 = vmatprep.mubr.bf16.mxu0 0
    %191 = vmatmul.mubr.bf16.gmra.mxu0 %v100
    %v192 = vpop.f32.mrf.mxu0
    %v193 = vadd.f32 %v72, %v192
    %v194 = vpop.f32.mrf.mxu0
    %v195 = vpop.f32.mrf.mxu0
    %v196 = vadd.f32 %v72, %v195
    %v197 = vpop.f32.mrf.mxu0
    %198 = vmatprep.mubr.bf16.mxu0 0
    %199 = vmatmul.mubr.bf16.gmra.mxu0 %v103
    %v200 = vpop.f32.mrf.mxu0
    %v201 = vadd.f32 %v72, %v200
    %v202 = vpop.f32.mrf.mxu0
    %v203 = vpop.f32.mrf.mxu0
    %v204 = vadd.f32 %v72, %v203
    %v205 = vpop.f32.mrf.mxu0
    %206 = vmatprep.mubr.bf16.mxu0 0
    %207 = vmatmul.mubr.bf16.gmra.mxu0 %v106
    %v208 = vpop.f32.mrf.mxu0
    %v209 = vadd.f32 %v72, %v208
    %v210 = vpop.f32.mrf.mxu0
    %v211 = vpop.f32.mrf.mxu0
    %v212 = vadd.f32 %v72, %v211
    %v213 = vpop.f32.mrf.mxu0
    %214 = vmatprep.mubr.bf16.mxu0 0
    %215 = vmatmul.mubr.bf16.gmra.mxu0 %v109
    %v216 = vpop.f32.mrf.mxu0
    %v217 = vadd.f32 %v72, %v216
    %v218 = vpop.f32.mrf.mxu0
    %v219 = vpop.f32.mrf.mxu0
    %v220 = vadd.f32 %v72, %v219
    %v221 = vpop.f32.mrf.mxu0
    %222 = vmatprep.mubr.bf16.mxu0 0
    %223 = vmatmul.mubr.bf16.gmra.mxu0 %v112
    %v224 = vpop.f32.mrf.mxu0
    %v225 = vadd.f32 %v72, %v224
    %v226 = vpop.f32.mrf.mxu0
    %v227 = vpop.f32.mrf.mxu0
    %v228 = vadd.f32 %v72, %v227
    %v229 = vpop.f32.mrf.mxu0
    %230 = vmatprep.mubr.bf16.mxu0 0
    %231 = vmatmul.mubr.bf16.gmra.mxu0 %v115
    %v232 = vpop.f32.mrf.mxu0
    %v233 = vadd.f32 %v72, %v232
    %v234 = vpop.f32.mrf.mxu0
    %v235 = vpop.f32.mrf.mxu0
    %v236 = vadd.f32 %v72, %v235
    %v237 = vpop.f32.mrf.mxu0
    %238 = vmatprep.mubr.bf16.mxu0 0
    %239 = vmatmul.mubr.bf16.gmra.mxu0 %v118
    %v240 = vpop.f32.mrf.mxu0
    %v241 = vadd.f32 %v72, %v240
    %v242 = vpop.f32.mrf.mxu0
    %v243 = vpop.f32.mrf.mxu0
    %v244 = vadd.f32 %v72, %v243
    %v245 = vpop.f32.mrf.mxu0
    %246 = vmatprep.mubr.bf16.mxu0 0
    %247 = vmatmul.mubr.bf16.gmra.mxu0 %v121
    %v248 = vpop.f32.mrf.mxu0
    %v249 = vadd.f32 %v72, %v248
    %v250 = vpop.f32.mrf.mxu0
    %v251 = vpop.f32.mrf.mxu0
    %v252 = vadd.f32 %v72, %v251
    %v253 = vpop.f32.mrf.mxu0
    %254 = vmatprep.mubr.bf16.mxu0 0
    %255 = vmatmul.mubr.bf16.gmra.mxu0 %v124
    %v256 = vpop.f32.mrf.mxu0
    %v257 = vadd.f32 %v72, %v256
    %v258 = vpop.f32.mrf.mxu0
    %v259 = vpop.f32.mrf.mxu0
    %v260 = vpop.f32.mrf.mxu0
    %261 = vdwg.mxu0
    %v262 = vadd.f32 %v161, 3.0
    %v263 = vadd.f32 %v164, 3.0
    %v264 = vadd.f32 %v169, 3.0
    %v265 = vadd.f32 %v172, 3.0
    %v266 = vadd.f32 %v177, 3.0
    %v267 = vadd.f32 %v180, 3.0
    %v268 = vadd.f32 %v185, 3.0
    %v269 = vadd.f32 %v188, 3.0
    %v270 = vadd.f32 %v193, 3.0
    %v271 = vadd.f32 %v196, 3.0
    %v272 = vadd.f32 %v201, 3.0
    %v273 = vadd.f32 %v204, 3.0
    %v274 = vadd.f32 %v209, 3.0
    %v275 = vadd.f32 %v212, 3.0
    %v276 = vadd.f32 %v217, 3.0
    %v277 = vadd.f32 %v220, 3.0
    %v278 = vadd.f32 %v225, 3.0
    %v279 = vadd.f32 %v228, 3.0
    %v280 = vadd.f32 %v233, 3.0
    %v281 = vadd.f32 %v236, 3.0
    %v282 = vadd.f32 %v241, 3.0
    %v283 = vadd.f32 %v244, 3.0
    %v284 = vadd.f32 %v249, 3.0
    %v285 = vadd.f32 %v252, 3.0
    %v286 = vadd.f32 %v257, 3.0
    %v287 = vmax.f32 %v262, 0.0
    %v288 = vmax.f32 %v263, 0.0
    %v289 = vmax.f32 %v264, 0.0
    %v290 = vmax.f32 %v265, 0.0
    %v291 = vmax.f32 %v266, 0.0
    %v292 = vmax.f32 %v267, 0.0
    %v293 = vmax.f32 %v268, 0.0
    %v294 = vmax.f32 %v269, 0.0
    %v295 = vmax.f32 %v270, 0.0
    %v296 = vmax.f32 %v271, 0.0
    %v297 = vmax.f32 %v272, 0.0
    %v298 = vmax.f32 %v273, 0.0
    %v299 = vmax.f32 %v274, 0.0
    %v300 = vmax.f32 %v275, 0.0
    %v301 = vmax.f32 %v276, 0.0
    %v302 = vmax.f32 %v277, 0.0
    %v303 = vmax.f32 %v278, 0.0
    %v304 = vmax.f32 %v279, 0.0
    %v305 = vmax.f32 %v280, 0.0
    %v306 = vmax.f32 %v281, 0.0
    %v307 = vmax.f32 %v282, 0.0
    %v308 = vmax.f32 %v283, 0.0
    %v309 = vmax.f32 %v284, 0.0
    %v310 = vmax.f32 %v285, 0.0
    %v311 = vmax.f32 %v286, 0.0
    %v312 = vmin.f32 %v287, 6.0
    %v313 = vmin.f32 %v288, 6.0
    %v314 = vmin.f32 %v289, 6.0
    %v315 = vmin.f32 %v290, 6.0
    %v316 = vmin.f32 %v291, 6.0
    %v317 = vmin.f32 %v292, 6.0
    %v318 = vmin.f32 %v293, 6.0
    %v319 = vmin.f32 %v294, 6.0
    %v320 = vmin.f32 %v295, 6.0
    %v321 = vmin.f32 %v296, 6.0
    %v322 = vmin.f32 %v297, 6.0
    %v323 = vmin.f32 %v298, 6.0
    %v324 = vmin.f32 %v299, 6.0
    %v325 = vmin.f32 %v300, 6.0
    %v326 = vmin.f32 %v301, 6.0
    %v327 = vmin.f32 %v302, 6.0
    %v328 = vmin.f32 %v303, 6.0
    %v329 = vmin.f32 %v304, 6.0
    %v330 = vmin.f32 %v305, 6.0
    %v331 = vmin.f32 %v306, 6.0
    %v332 = vmin.f32 %v307, 6.0
    %v333 = vmin.f32 %v308, 6.0
    %v334 = vmin.f32 %v309, 6.0
    %v335 = vmin.f32 %v310, 6.0
    %v336 = vmin.f32 %v311, 6.0
    %v337 = vmul.f32 %v161, %v312
    %v338 = vmul.f32 %v164, %v313
    %v339 = vmul.f32 %v169, %v314
    %v340 = vmul.f32 %v172, %v315
    %v341 = vmul.f32 %v177, %v316
    %v342 = vmul.f32 %v180, %v317
    %v343 = vmul.f32 %v185, %v318
    %v344 = vmul.f32 %v188, %v319
    %v345 = vmul.f32 %v193, %v320
    %v346 = vmul.f32 %v196, %v321
    %v347 = vmul.f32 %v201, %v322
    %v348 = vmul.f32 %v204, %v323
    %v349 = vmul.f32 %v209, %v324
    %v350 = vmul.f32 %v212, %v325
    %v351 = vmul.f32 %v217, %v326
    %v352 = vmul.f32 %v220, %v327
    %v353 = vmul.f32 %v225, %v328
    %v354 = vmul.f32 %v228, %v329
    %v355 = vmul.f32 %v233, %v330
    %v356 = vmul.f32 %v236, %v331
    %v357 = vmul.f32 %v241, %v332
    %v358 = vmul.f32 %v244, %v333
    %v359 = vmul.f32 %v249, %v334
    %v360 = vmul.f32 %v252, %v335
    %v361 = vmul.f32 %v257, %v336
    %v362 = vmul.f32 %v337, 0.16666667
    %v363 = vmul.f32 %v338, 0.16666667
    %v364 = vmul.f32 %v339, 0.16666667
    %v365 = vmul.f32 %v340, 0.16666667
    %v366 = vmul.f32 %v341, 0.16666667
    %v367 = vmul.f32 %v342, 0.16666667
    %v368 = vmul.f32 %v343, 0.16666667
    %v369 = vmul.f32 %v344, 0.16666667
    %v370 = vmul.f32 %v345, 0.16666667
    %v371 = vmul.f32 %v346, 0.16666667
    %v372 = vmul.f32 %v347, 0.16666667
    %v373 = vmul.f32 %v348, 0.16666667
    %v374 = vmul.f32 %v349, 0.16666667
    %v375 = vmul.f32 %v350, 0.16666667
    %v376 = vmul.f32 %v351, 0.16666667
    %v377 = vmul.f32 %v352, 0.16666667
    %v378 = vmul.f32 %v353, 0.16666667
    %v379 = vmul.f32 %v354, 0.16666667
    %v380 = vmul.f32 %v355, 0.16666667
    %v381 = vmul.f32 %v356, 0.16666667
    %v382 = vmul.f32 %v357, 0.16666667
    %v383 = vmul.f32 %v358, 0.16666667
    %v384 = vmul.f32 %v359, 0.16666667
    %v385 = vmul.f32 %v360, 0.16666667
    %v386 = vmul.f32 %v361, 0.16666667
    %v387 = vpack.c.bf16 %v363, %v362
    %v388 = vpack.c.bf16 %v365, %v364
    %v389 = vpack.c.bf16 %v367, %v366
    %v390 = vpack.c.bf16 %v369, %v368
    %v391 = vpack.c.bf16 %v371, %v370
    %v392 = vpack.c.bf16 %v373, %v372
    %v393 = vpack.c.bf16 %v375, %v374
    %v394 = vpack.c.bf16 %v377, %v376
    %v395 = vpack.c.bf16 %v379, %v378
    %v396 = vpack.c.bf16 %v381, %v380
    %v397 = vpack.c.bf16 %v383, %v382
    %v398 = vpack.c.bf16 %v385, %v384
    %v399 = vpack.c.bf16 %v386, %v386
    %v400 = vld [vmem:[%s3] sm:$0xf]
    %v401 = vld [vmem:[%s3 + $0x4] sm:$0xf]
    %v402 = vld [vmem:[%s3 + $0x8] sm:$0xf]
    %v403 = vld [vmem:[%s3 + $0xc] sm:$0xf]
    %v404 = vld [vmem:[%s4] sm:$0xf]
    %v405 = vld [vmem:[%s4 + $0x4] sm:$0xf]
    %v406 = vld [vmem:[%s4 + $0x8] sm:$0xf]
    %v407 = vld [vmem:[%s4 + $0xc] sm:$0xf]
    %v412 = vunpack.c.l.b16 %v404
    %v413 = vunpack.c.l.b16 %v405
    %v414 = vunpack.c.l.b16 %v406
    %v415 = vunpack.c.l.b16 %v407
    %v416 = vpack.c.b16 %v413, %v412
    %v417 = vpack.c.b16 %v415, %v414
    %v421 = vsel %vm86, %v387, 0
    %v424 = vsel %vm86, %v388, 0
    %v427 = vsel %vm86, %v389, 0
    %v430 = vsel %vm86, %v390, 0
    %v433 = vsel %vm86, %v391, 0
    %v436 = vsel %vm86, %v392, 0
    %v439 = vsel %vm86, %v393, 0
    %v442 = vsel %vm86, %v394, 0
    %v445 = vsel %vm86, %v395, 0
    %v448 = vsel %vm86, %v396, 0
    %v451 = vsel %vm86, %v397, 0
    %v454 = vsel %vm86, %v398, 0
    %v457 = vsel %vm86, %v399, 0
    %459 = vmatprep.subr.bf16.mxu0 0
    %460 = vmatpush1.bf16.msra.mxu0 0
    %461 = vmatprep.subr.bf16.mxu0 0
    %462 = vmatpush1.bf16.msra.mxu0 0
    %463 = vmatprep.subr.bf16.mxu0 0
    %464 = vmatpush1.bf16.msra.mxu0 0
    %465 = vmatprep.subr.bf16.mxu0 0
    %466 = vmatpush1.bf16.msra.mxu0 0
    %467 = vmatprep.subr.bf16.mxu0 0
    %468 = vmatpush1.bf16.msra.mxu0 0
    %469 = vmatprep.subr.bf16.mxu0 0
    %470 = vmatpush1.bf16.msra.mxu0 0
    %471 = vmatprep.subr.bf16.mxu0 0
    %472 = vmatpush1.bf16.msra.mxu0 %v417
    %473 = vmatprep.subr.bf16.mxu0 0
    %474 = vmatpush1.bf16.msra.mxu0 %v416
    %475 = vmatprep.subr.bf16.mxu0 0
    %476 = vmatpush2.bf16.msra.mxu0 0
    %477 = vmatprep.subr.bf16.mxu0 0
    %478 = vmatpush2.bf16.msra.mxu0 0
    %479 = vmatprep.subr.bf16.mxu0 0
    %480 = vmatpush2.bf16.msra.mxu0 0
    %481 = vmatprep.subr.bf16.mxu0 0
    %482 = vmatpush2.bf16.msra.mxu0 0
    %483 = vmatprep.subr.bf16.mxu0 0
    %484 = vmatpush2.bf16.msra.mxu0 0
    %485 = vmatprep.subr.bf16.mxu0 0
    %486 = vmatpush2.bf16.msra.mxu0 0
    %487 = vmatprep.subr.bf16.mxu0 0
    %488 = vmatpush2.bf16.msra.mxu0 0
    %489 = vmatprep.subr.bf16.mxu0 0
    %490 = vmatpush2.bf16.msra.mxu0 0
    %491 = vmatprep.mubr.bf16.mxu0 0
    %492 = vmatmul.mubr.bf16.gmra.mxu0 %v421
    %v493 = vpop.f32.mrf.mxu0
    %v494 = vadd.f32 0.0, %v493
    %v495 = vpop.f32.mrf.mxu0
    %v496 = vpop.f32.mrf.mxu0
    %v497 = vadd.f32 0.0, %v496
    %v498 = vpop.f32.mrf.mxu0
    %499 = vmatprep.mubr.bf16.mxu0 0
    %500 = vmatmul.mubr.bf16.gmra.mxu0 %v424
    %v501 = vpop.f32.mrf.mxu0
    %v502 = vadd.f32 0.0, %v501
    %v503 = vpop.f32.mrf.mxu0
    %v504 = vpop.f32.mrf.mxu0
    %v505 = vadd.f32 0.0, %v504
    %v506 = vpop.f32.mrf.mxu0
    %507 = vmatprep.mubr.bf16.mxu0 0
    %508 = vmatmul.mubr.bf16.gmra.mxu0 %v427
    %v509 = vpop.f32.mrf.mxu0
    %v510 = vadd.f32 0.0, %v509
    %v511 = vpop.f32.mrf.mxu0
    %v512 = vpop.f32.mrf.mxu0
    %v513 = vadd.f32 0.0, %v512
    %v514 = vpop.f32.mrf.mxu0
    %515 = vmatprep.mubr.bf16.mxu0 0
    %516 = vmatmul.mubr.bf16.gmra.mxu0 %v430
    %v517 = vpop.f32.mrf.mxu0
    %v518 = vadd.f32 0.0, %v517
    %v519 = vpop.f32.mrf.mxu0
    %v520 = vpop.f32.mrf.mxu0
    %v521 = vadd.f32 0.0, %v520
    %v522 = vpop.f32.mrf.mxu0
    %523 = vmatprep.mubr.bf16.mxu0 0
    %524 = vmatmul.mubr.bf16.gmra.mxu0 %v433
    %v525 = vpop.f32.mrf.mxu0
    %v526 = vadd.f32 0.0, %v525
    %v527 = vpop.f32.mrf.mxu0
    %v528 = vpop.f32.mrf.mxu0
    %v529 = vadd.f32 0.0, %v528
    %v530 = vpop.f32.mrf.mxu0
    %531 = vmatprep.mubr.bf16.mxu0 0
    %532 = vmatmul.mubr.bf16.gmra.mxu0 %v436
    %v533 = vpop.f32.mrf.mxu0
    %v534 = vadd.f32 0.0, %v533
    %v535 = vpop.f32.mrf.mxu0
    %v536 = vpop.f32.mrf.mxu0
    %v537 = vadd.f32 0.0, %v536
    %v538 = vpop.f32.mrf.mxu0
    %539 = vmatprep.mubr.bf16.mxu0 0
    %540 = vmatmul.mubr.bf16.gmra.mxu0 %v439
    %v541 = vpop.f32.mrf.mxu0
    %v542 = vadd.f32 0.0, %v541
    %v543 = vpop.f32.mrf.mxu0
    %v544 = vpop.f32.mrf.mxu0
    %v545 = vadd.f32 0.0, %v544
    %v546 = vpop.f32.mrf.mxu0
    %547 = vmatprep.mubr.bf16.mxu0 0
    %548 = vmatmul.mubr.bf16.gmra.mxu0 %v442
    %v549 = vpop.f32.mrf.mxu0
    %v550 = vadd.f32 0.0, %v549
    %v551 = vpop.f32.mrf.mxu0
    %v552 = vpop.f32.mrf.mxu0
    %v553 = vadd.f32 0.0, %v552
    %v554 = vpop.f32.mrf.mxu0
    %555 = vmatprep.mubr.bf16.mxu0 0
    %556 = vmatmul.mubr.bf16.gmra.mxu0 %v445
    %v557 = vpop.f32.mrf.mxu0
    %v558 = vadd.f32 0.0, %v557
    %v559 = vpop.f32.mrf.mxu0
    %v560 = vpop.f32.mrf.mxu0
    %v561 = vadd.f32 0.0, %v560
    %v562 = vpop.f32.mrf.mxu0
    %563 = vmatprep.mubr.bf16.mxu0 0
    %564 = vmatmul.mubr.bf16.gmra.mxu0 %v448
    %v565 = vpop.f32.mrf.mxu0
    %v566 = vadd.f32 0.0, %v565
    %v567 = vpop.f32.mrf.mxu0
    %v568 = vpop.f32.mrf.mxu0
    %v569 = vadd.f32 0.0, %v568
    %v570 = vpop.f32.mrf.mxu0
    %571 = vmatprep.mubr.bf16.mxu0 0
    %572 = vmatmul.mubr.bf16.gmra.mxu0 %v451
    %v573 = vpop.f32.mrf.mxu0
    %v574 = vadd.f32 0.0, %v573
    %v575 = vpop.f32.mrf.mxu0
    %v576 = vpop.f32.mrf.mxu0
    %v577 = vadd.f32 0.0, %v576
    %v578 = vpop.f32.mrf.mxu0
    %579 = vmatprep.mubr.bf16.mxu0 0
    %580 = vmatmul.mubr.bf16.gmra.mxu0 %v454
    %v581 = vpop.f32.mrf.mxu0
    %v582 = vadd.f32 0.0, %v581
    %v583 = vpop.f32.mrf.mxu0
    %v584 = vpop.f32.mrf.mxu0
    %v585 = vadd.f32 0.0, %v584
    %v586 = vpop.f32.mrf.mxu0
    %587 = vmatprep.mubr.bf16.mxu0 0
    %588 = vmatmul.mubr.bf16.gmra.mxu0 %v457
    %v589 = vpop.f32.mrf.mxu0
    %v590 = vadd.f32 0.0, %v589
    %v591 = vpop.f32.mrf.mxu0
    %v592 = vpop.f32.mrf.mxu0
    %v593 = vpop.f32.mrf.mxu0
    %594 = vdwg.mxu0
    %v599 = vunpack.c.l.b16 %v400
    %v600 = vunpack.c.l.b16 %v401
    %v601 = vunpack.c.l.b16 %v402
    %v602 = vunpack.c.l.b16 %v403
    %v603 = vpack.c.b16 %v600, %v599
    %v604 = vpack.c.b16 %v602, %v601
    %607 = vmatprep.subr.bf16.mxu0 0
    %608 = vmatpush1.bf16.msra.mxu0 0
    %609 = vmatprep.subr.bf16.mxu0 0
    %610 = vmatpush1.bf16.msra.mxu0 0
    %611 = vmatprep.subr.bf16.mxu0 0
    %612 = vmatpush1.bf16.msra.mxu0 0
    %613 = vmatprep.subr.bf16.mxu0 0
    %614 = vmatpush1.bf16.msra.mxu0 0
    %615 = vmatprep.subr.bf16.mxu0 0
    %616 = vmatpush1.bf16.msra.mxu0 0
    %617 = vmatprep.subr.bf16.mxu0 0
    %618 = vmatpush1.bf16.msra.mxu0 0
    %619 = vmatprep.subr.bf16.mxu0 0
    %620 = vmatpush1.bf16.msra.mxu0 %v604
    %621 = vmatprep.subr.bf16.mxu0 0
    %622 = vmatpush1.bf16.msra.mxu0 %v603
    %623 = vmatprep.subr.bf16.mxu0 0
    %624 = vmatpush2.bf16.msra.mxu0 0
    %625 = vmatprep.subr.bf16.mxu0 0
    %626 = vmatpush2.bf16.msra.mxu0 0
    %627 = vmatprep.subr.bf16.mxu0 0
    %628 = vmatpush2.bf16.msra.mxu0 0
    %629 = vmatprep.subr.bf16.mxu0 0
    %630 = vmatpush2.bf16.msra.mxu0 0
    %631 = vmatprep.subr.bf16.mxu0 0
    %632 = vmatpush2.bf16.msra.mxu0 0
    %633 = vmatprep.subr.bf16.mxu0 0
    %634 = vmatpush2.bf16.msra.mxu0 0
    %635 = vmatprep.subr.bf16.mxu0 0
    %636 = vmatpush2.bf16.msra.mxu0 0
    %637 = vmatprep.subr.bf16.mxu0 0
    %638 = vmatpush2.bf16.msra.mxu0 0
    %639 = vmatprep.mubr.bf16.mxu0 0
    %640 = vmatmul.mubr.bf16.gmra.mxu0 %v88
    %v641 = vpop.f32.mrf.mxu0
    %v642 = vadd.f32 %v494, %v641
    %v643 = vpop.f32.mrf.mxu0
    %v644 = vpop.f32.mrf.mxu0
    %v645 = vadd.f32 %v497, %v644
    %v646 = vpop.f32.mrf.mxu0
    %647 = vmatprep.mubr.bf16.mxu0 0
    %648 = vmatmul.mubr.bf16.gmra.mxu0 %v91
    %v649 = vpop.f32.mrf.mxu0
    %v650 = vadd.f32 %v502, %v649
    %v651 = vpop.f32.mrf.mxu0
    %v652 = vpop.f32.mrf.mxu0
    %v653 = vadd.f32 %v505, %v652
    %v654 = vpop.f32.mrf.mxu0
    %655 = vmatprep.mubr.bf16.mxu0 0
    %656 = vmatmul.mubr.bf16.gmra.mxu0 %v94
    %v657 = vpop.f32.mrf.mxu0
    %v658 = vadd.f32 %v510, %v657
    %v659 = vpop.f32.mrf.mxu0
    %v660 = vpop.f32.mrf.mxu0
    %v661 = vadd.f32 %v513, %v660
    %v662 = vpop.f32.mrf.mxu0
    %663 = vmatprep.mubr.bf16.mxu0 0
    %664 = vmatmul.mubr.bf16.gmra.mxu0 %v97
    %v665 = vpop.f32.mrf.mxu0
    %v666 = vadd.f32 %v518, %v665
    %v667 = vpop.f32.mrf.mxu0
    %v668 = vpop.f32.mrf.mxu0
    %v669 = vadd.f32 %v521, %v668
    %v670 = vpop.f32.mrf.mxu0
    %671 = vmatprep.mubr.bf16.mxu0 0
    %672 = vmatmul.mubr.bf16.gmra.mxu0 %v100
    %v673 = vpop.f32.mrf.mxu0
    %v674 = vadd.f32 %v526, %v673
    %v675 = vpop.f32.mrf.mxu0
    %v676 = vpop.f32.mrf.mxu0
    %v677 = vadd.f32 %v529, %v676
    %v678 = vpop.f32.mrf.mxu0
    %679 = vmatprep.mubr.bf16.mxu0 0
    %680 = vmatmul.mubr.bf16.gmra.mxu0 %v103
    %v681 = vpop.f32.mrf.mxu0
    %v682 = vadd.f32 %v534, %v681
    %v683 = vpop.f32.mrf.mxu0
    %v684 = vpop.f32.mrf.mxu0
    %v685 = vadd.f32 %v537, %v684
    %v686 = vpop.f32.mrf.mxu0
    %687 = vmatprep.mubr.bf16.mxu0 0
    %688 = vmatmul.mubr.bf16.gmra.mxu0 %v106
    %v689 = vpop.f32.mrf.mxu0
    %v690 = vadd.f32 %v542, %v689
    %v691 = vpop.f32.mrf.mxu0
    %v692 = vpop.f32.mrf.mxu0
    %v693 = vadd.f32 %v545, %v692
    %v694 = vpop.f32.mrf.mxu0
    %695 = vmatprep.mubr.bf16.mxu0 0
    %696 = vmatmul.mubr.bf16.gmra.mxu0 %v109
    %v697 = vpop.f32.mrf.mxu0
    %v698 = vadd.f32 %v550, %v697
    %v699 = vpop.f32.mrf.mxu0
    %v700 = vpop.f32.mrf.mxu0
    %v701 = vadd.f32 %v553, %v700
    %v702 = vpop.f32.mrf.mxu0
    %703 = vmatprep.mubr.bf16.mxu0 0
    %704 = vmatmul.mubr.bf16.gmra.mxu0 %v112
    %v705 = vpop.f32.mrf.mxu0
    %v706 = vadd.f32 %v558, %v705
    %v707 = vpop.f32.mrf.mxu0
    %v708 = vpop.f32.mrf.mxu0
    %v709 = vadd.f32 %v561, %v708
    %v710 = vpop.f32.mrf.mxu0
    %711 = vmatprep.mubr.bf16.mxu0 0
    %712 = vmatmul.mubr.bf16.gmra.mxu0 %v115
    %v713 = vpop.f32.mrf.mxu0
    %v714 = vadd.f32 %v566, %v713
    %v715 = vpop.f32.mrf.mxu0
    %v716 = vpop.f32.mrf.mxu0
    %v717 = vadd.f32 %v569, %v716
    %v718 = vpop.f32.mrf.mxu0
    %719 = vmatprep.mubr.bf16.mxu0 0
    %720 = vmatmul.mubr.bf16.gmra.mxu0 %v118
    %v721 = vpop.f32.mrf.mxu0
    %v722 = vadd.f32 %v574, %v721
    %v723 = vpop.f32.mrf.mxu0
    %v724 = vpop.f32.mrf.mxu0
    %v725 = vadd.f32 %v577, %v724
    %v726 = vpop.f32.mrf.mxu0
    %727 = vmatprep.mubr.bf16.mxu0 0
    %728 = vmatmul.mubr.bf16.gmra.mxu0 %v121
    %v729 = vpop.f32.mrf.mxu0
    %v730 = vadd.f32 %v582, %v729
    %v731 = vpop.f32.mrf.mxu0
    %v732 = vpop.f32.mrf.mxu0
    %v733 = vadd.f32 %v585, %v732
    %v734 = vpop.f32.mrf.mxu0
    %735 = vmatprep.mubr.bf16.mxu0 0
    %736 = vmatmul.mubr.bf16.gmra.mxu0 %v124
    %v737 = vpop.f32.mrf.mxu0
    %v738 = vadd.f32 %v590, %v737
    %v739 = vpop.f32.mrf.mxu0
    %v740 = vpop.f32.mrf.mxu0
    %v741 = vpop.f32.mrf.mxu0
    %742 = vdwg.mxu0
    %v743 = vld [vmem:[%s5] sm:$0x1]
    %v745 = vlaneseq
    %v746 = vshrl.u32 %v745, 7
    %v747 = vsub.s32 0, %v746
    %v748 = vrot.slane %v743, %v747
    %v750 = vadd.f32 %v642, %v748
    %v751 = vadd.f32 %v645, %v748
    %v752 = vadd.f32 %v650, %v748
    %v753 = vadd.f32 %v653, %v748
    %v754 = vadd.f32 %v658, %v748
    %v755 = vadd.f32 %v661, %v748
    %v756 = vadd.f32 %v666, %v748
    %v757 = vadd.f32 %v669, %v748
    %v758 = vadd.f32 %v674, %v748
    %v759 = vadd.f32 %v677, %v748
    %v760 = vadd.f32 %v682, %v748
    %v761 = vadd.f32 %v685, %v748
    %v762 = vadd.f32 %v690, %v748
    %v763 = vadd.f32 %v693, %v748
    %v764 = vadd.f32 %v698, %v748
    %v765 = vadd.f32 %v701, %v748
    %v766 = vadd.f32 %v706, %v748
    %v767 = vadd.f32 %v709, %v748
    %v768 = vadd.f32 %v714, %v748
    %v769 = vadd.f32 %v717, %v748
    %v770 = vadd.f32 %v722, %v748
    %v771 = vadd.f32 %v725, %v748
    %v772 = vadd.f32 %v730, %v748
    %v773 = vadd.f32 %v733, %v748
    %v774 = vadd.f32 %v738, %v748
    %v775 = vadd.f32 %v750, 3.0
    %v776 = vadd.f32 %v751, 3.0
    %v777 = vadd.f32 %v752, 3.0
    %v778 = vadd.f32 %v753, 3.0
    %v779 = vadd.f32 %v754, 3.0
    %v780 = vadd.f32 %v755, 3.0
    %v781 = vadd.f32 %v756, 3.0
    %v782 = vadd.f32 %v757, 3.0
    %v783 = vadd.f32 %v758, 3.0
    %v784 = vadd.f32 %v759, 3.0
    %v785 = vadd.f32 %v760, 3.0
    %v786 = vadd.f32 %v761, 3.0
    %v787 = vadd.f32 %v762, 3.0
    %v788 = vadd.f32 %v763, 3.0
    %v789 = vadd.f32 %v764, 3.0
    %v790 = vadd.f32 %v765, 3.0
    %v791 = vadd.f32 %v766, 3.0
    %v792 = vadd.f32 %v767, 3.0
    %v793 = vadd.f32 %v768, 3.0
    %v794 = vadd.f32 %v769, 3.0
    %v795 = vadd.f32 %v770, 3.0
    %v796 = vadd.f32 %v771, 3.0
    %v797 = vadd.f32 %v772, 3.0
    %v798 = vadd.f32 %v773, 3.0
    %v799 = vadd.f32 %v774, 3.0
    %v800 = vmax.f32 %v775, 0.0
    %v801 = vmax.f32 %v776, 0.0
    %v802 = vmax.f32 %v777, 0.0
    %v803 = vmax.f32 %v778, 0.0
    %v804 = vmax.f32 %v779, 0.0
    %v805 = vmax.f32 %v780, 0.0
    %v806 = vmax.f32 %v781, 0.0
    %v807 = vmax.f32 %v782, 0.0
    %v808 = vmax.f32 %v783, 0.0
    %v809 = vmax.f32 %v784, 0.0
    %v810 = vmax.f32 %v785, 0.0
    %v811 = vmax.f32 %v786, 0.0
    %v812 = vmax.f32 %v787, 0.0
    %v813 = vmax.f32 %v788, 0.0
    %v814 = vmax.f32 %v789, 0.0
    %v815 = vmax.f32 %v790, 0.0
    %v816 = vmax.f32 %v791, 0.0
    %v817 = vmax.f32 %v792, 0.0
    %v818 = vmax.f32 %v793, 0.0
    %v819 = vmax.f32 %v794, 0.0
    %v820 = vmax.f32 %v795, 0.0
    %v821 = vmax.f32 %v796, 0.0
    %v822 = vmax.f32 %v797, 0.0
    %v823 = vmax.f32 %v798, 0.0
    %v824 = vmax.f32 %v799, 0.0
    %v825 = vmin.f32 %v800, 6.0
    %v826 = vmin.f32 %v801, 6.0
    %v827 = vmin.f32 %v802, 6.0
    %v828 = vmin.f32 %v803, 6.0
    %v829 = vmin.f32 %v804, 6.0
    %v830 = vmin.f32 %v805, 6.0
    %v831 = vmin.f32 %v806, 6.0
    %v832 = vmin.f32 %v807, 6.0
    %v833 = vmin.f32 %v808, 6.0
    %v834 = vmin.f32 %v809, 6.0
    %v835 = vmin.f32 %v810, 6.0
    %v836 = vmin.f32 %v811, 6.0
    %v837 = vmin.f32 %v812, 6.0
    %v838 = vmin.f32 %v813, 6.0
    %v839 = vmin.f32 %v814, 6.0
    %v840 = vmin.f32 %v815, 6.0
    %v841 = vmin.f32 %v816, 6.0
    %v842 = vmin.f32 %v817, 6.0
    %v843 = vmin.f32 %v818, 6.0
    %v844 = vmin.f32 %v819, 6.0
    %v845 = vmin.f32 %v820, 6.0
    %v846 = vmin.f32 %v821, 6.0
    %v847 = vmin.f32 %v822, 6.0
    %v848 = vmin.f32 %v823, 6.0
    %v849 = vmin.f32 %v824, 6.0
    %v850 = vmul.f32 %v750, %v825
    %v851 = vmul.f32 %v751, %v826
    %v852 = vmul.f32 %v752, %v827
    %v853 = vmul.f32 %v753, %v828
    %v854 = vmul.f32 %v754, %v829
    %v855 = vmul.f32 %v755, %v830
    %v856 = vmul.f32 %v756, %v831
    %v857 = vmul.f32 %v757, %v832
    %v858 = vmul.f32 %v758, %v833
    %v859 = vmul.f32 %v759, %v834
    %v860 = vmul.f32 %v760, %v835
    %v861 = vmul.f32 %v761, %v836
    %v862 = vmul.f32 %v762, %v837
    %v863 = vmul.f32 %v763, %v838
    %v864 = vmul.f32 %v764, %v839
    %v865 = vmul.f32 %v765, %v840
    %v866 = vmul.f32 %v766, %v841
    %v867 = vmul.f32 %v767, %v842
    %v868 = vmul.f32 %v768, %v843
    %v869 = vmul.f32 %v769, %v844
    %v870 = vmul.f32 %v770, %v845
    %v871 = vmul.f32 %v771, %v846
    %v872 = vmul.f32 %v772, %v847
    %v873 = vmul.f32 %v773, %v848
    %v874 = vmul.f32 %v774, %v849
    %v875 = vmul.f32 %v850, 0.16666667
    %v876 = vmul.f32 %v851, 0.16666667
    %v877 = vmul.f32 %v852, 0.16666667
    %v878 = vmul.f32 %v853, 0.16666667
    %v879 = vmul.f32 %v854, 0.16666667
    %v880 = vmul.f32 %v855, 0.16666667
    %v881 = vmul.f32 %v856, 0.16666667
    %v882 = vmul.f32 %v857, 0.16666667
    %v883 = vmul.f32 %v858, 0.16666667
    %v884 = vmul.f32 %v859, 0.16666667
    %v885 = vmul.f32 %v860, 0.16666667
    %v886 = vmul.f32 %v861, 0.16666667
    %v887 = vmul.f32 %v862, 0.16666667
    %v888 = vmul.f32 %v863, 0.16666667
    %v889 = vmul.f32 %v864, 0.16666667
    %v890 = vmul.f32 %v865, 0.16666667
    %v891 = vmul.f32 %v866, 0.16666667
    %v892 = vmul.f32 %v867, 0.16666667
    %v893 = vmul.f32 %v868, 0.16666667
    %v894 = vmul.f32 %v869, 0.16666667
    %v895 = vmul.f32 %v870, 0.16666667
    %v896 = vmul.f32 %v871, 0.16666667
    %v897 = vmul.f32 %v872, 0.16666667
    %v898 = vmul.f32 %v873, 0.16666667
    %v899 = vmul.f32 %v874, 0.16666667
    %925 = vrot.lane.b32.xlu0 %v362, 32
    %v926 = vpop.permute.xlu0 %925
    %927 = vrot.lane.b32.xlu0 %v363, 32
    %v928 = vpop.permute.xlu0 %927
    %929 = vrot.lane.b32.xlu0 %v364, 32
    %v930 = vpop.permute.xlu0 %929
    %931 = vrot.lane.b32.xlu0 %v365, 32
    %v932 = vpop.permute.xlu0 %931
    %933 = vrot.lane.b32.xlu0 %v366, 32
    %v934 = vpop.permute.xlu0 %933
    %935 = vrot.lane.b32.xlu0 %v367, 32
    %v936 = vpop.permute.xlu0 %935
    %937 = vrot.lane.b32.xlu0 %v368, 32
    %v938 = vpop.permute.xlu0 %937
    %939 = vrot.lane.b32.xlu0 %v369, 32
    %v940 = vpop.permute.xlu0 %939
    %941 = vrot.lane.b32.xlu0 %v370, 32
    %v942 = vpop.permute.xlu0 %941
    %943 = vrot.lane.b32.xlu0 %v371, 32
    %v944 = vpop.permute.xlu0 %943
    %945 = vrot.lane.b32.xlu0 %v372, 32
    %v946 = vpop.permute.xlu0 %945
    %947 = vrot.lane.b32.xlu0 %v373, 32
    %v948 = vpop.permute.xlu0 %947
    %949 = vrot.lane.b32.xlu0 %v374, 32
    %v950 = vpop.permute.xlu0 %949
    %951 = vrot.lane.b32.xlu0 %v375, 32
    %v952 = vpop.permute.xlu0 %951
    %953 = vrot.lane.b32.xlu0 %v376, 32
    %v954 = vpop.permute.xlu0 %953
    %955 = vrot.lane.b32.xlu0 %v377, 32
    %v956 = vpop.permute.xlu0 %955
    %957 = vrot.lane.b32.xlu0 %v378, 32
    %v958 = vpop.permute.xlu0 %957
    %959 = vrot.lane.b32.xlu0 %v379, 32
    %v960 = vpop.permute.xlu0 %959
    %961 = vrot.lane.b32.xlu0 %v380, 32
    %v962 = vpop.permute.xlu0 %961
    %963 = vrot.lane.b32.xlu0 %v381, 32
    %v964 = vpop.permute.xlu0 %963
    %965 = vrot.lane.b32.xlu0 %v382, 32
    %v966 = vpop.permute.xlu0 %965
    %967 = vrot.lane.b32.xlu0 %v383, 32
    %v968 = vpop.permute.xlu0 %967
    %969 = vrot.lane.b32.xlu0 %v384, 32
    %v970 = vpop.permute.xlu0 %969
    %971 = vrot.lane.b32.xlu0 %v385, 32
    %v972 = vpop.permute.xlu0 %971
    %973 = vrot.lane.b32.xlu0 %v386, 32
    %v974 = vpop.permute.xlu0 %973
    %1025 = vrot.lane.b32.xlu0 %v875, 64
    %v1026 = vpop.permute.xlu0 %1025
    %1027 = vrot.lane.b32.xlu0 %v876, 64
    %v1028 = vpop.permute.xlu0 %1027
    %1029 = vrot.lane.b32.xlu0 %v877, 64
    %v1030 = vpop.permute.xlu0 %1029
    %1031 = vrot.lane.b32.xlu0 %v878, 64
    %v1032 = vpop.permute.xlu0 %1031
    %1033 = vrot.lane.b32.xlu0 %v879, 64
    %v1034 = vpop.permute.xlu0 %1033
    %1035 = vrot.lane.b32.xlu0 %v880, 64
    %v1036 = vpop.permute.xlu0 %1035
    %1037 = vrot.lane.b32.xlu0 %v881, 64
    %v1038 = vpop.permute.xlu0 %1037
    %1039 = vrot.lane.b32.xlu0 %v882, 64
    %v1040 = vpop.permute.xlu0 %1039
    %1041 = vrot.lane.b32.xlu0 %v883, 64
    %v1042 = vpop.permute.xlu0 %1041
    %1043 = vrot.lane.b32.xlu0 %v884, 64
    %v1044 = vpop.permute.xlu0 %1043
    %1045 = vrot.lane.b32.xlu0 %v885, 64
    %v1046 = vpop.permute.xlu0 %1045
    %1047 = vrot.lane.b32.xlu0 %v886, 64
    %v1048 = vpop.permute.xlu0 %1047
    %1049 = vrot.lane.b32.xlu0 %v887, 64
    %v1050 = vpop.permute.xlu0 %1049
    %1051 = vrot.lane.b32.xlu0 %v888, 64
    %v1052 = vpop.permute.xlu0 %1051
    %1053 = vrot.lane.b32.xlu0 %v889, 64
    %v1054 = vpop.permute.xlu0 %1053
    %1055 = vrot.lane.b32.xlu0 %v890, 64
    %v1056 = vpop.permute.xlu0 %1055
    %1057 = vrot.lane.b32.xlu0 %v891, 64
    %v1058 = vpop.permute.xlu0 %1057
    %1059 = vrot.lane.b32.xlu0 %v892, 64
    %v1060 = vpop.permute.xlu0 %1059
    %1061 = vrot.lane.b32.xlu0 %v893, 64
    %v1062 = vpop.permute.xlu0 %1061
    %1063 = vrot.lane.b32.xlu0 %v894, 64
    %v1064 = vpop.permute.xlu0 %1063
    %1065 = vrot.lane.b32.xlu0 %v895, 64
    %v1066 = vpop.permute.xlu0 %1065
    %1067 = vrot.lane.b32.xlu0 %v896, 64
    %v1068 = vpop.permute.xlu0 %1067
    %1069 = vrot.lane.b32.xlu0 %v897, 64
    %v1070 = vpop.permute.xlu0 %1069
    %1071 = vrot.lane.b32.xlu0 %v898, 64
    %v1072 = vpop.permute.xlu0 %1071
    %1073 = vrot.lane.b32.xlu0 %v899, 64
    %v1074 = vpop.permute.xlu0 %1073
    %v1100 = vsel %vm86, %v25, %v926
    %v1101 = vsel %vm86, %v26, %v928
    %v1102 = vsel %vm86, %v27, %v930
    %v1103 = vsel %vm86, %v28, %v932
    %v1104 = vsel %vm86, %v29, %v934
    %v1105 = vsel %vm86, %v30, %v936
    %v1106 = vsel %vm86, %v31, %v938
    %v1107 = vsel %vm86, %v32, %v940
    %v1108 = vsel %vm86, %v33, %v942
    %v1109 = vsel %vm86, %v34, %v944
    %v1110 = vsel %vm86, %v35, %v946
    %v1111 = vsel %vm86, %v36, %v948
    %v1112 = vsel %vm86, %v37, %v950
    %v1113 = vsel %vm86, %v38, %v952
    %v1114 = vsel %vm86, %v39, %v954
    %v1115 = vsel %vm86, %v40, %v956
    %v1116 = vsel %vm86, %v41, %v958
    %v1117 = vsel %vm86, %v42, %v960
    %v1118 = vsel %vm86, %v43, %v962
    %v1119 = vsel %vm86, %v44, %v964
    %v1120 = vsel %vm86, %v45, %v966
    %v1121 = vsel %vm86, %v46, %v968
    %v1122 = vsel %vm86, %v47, %v970
    %v1123 = vsel %vm86, %v48, %v972
    %v1124 = vsel %vm86, %v49, %v974
    %vm1125 = vcmask 523264
    %v1126 = vsel %vm1125, %v1100, %v1026
    %v1127 = vsel %vm1125, %v1101, %v1028
    %v1128 = vsel %vm1125, %v1102, %v1030
    %v1129 = vsel %vm1125, %v1103, %v1032
    %v1130 = vsel %vm1125, %v1104, %v1034
    %v1131 = vsel %vm1125, %v1105, %v1036
    %v1132 = vsel %vm1125, %v1106, %v1038
    %v1133 = vsel %vm1125, %v1107, %v1040
    %v1134 = vsel %vm1125, %v1108, %v1042
    %v1135 = vsel %vm1125, %v1109, %v1044
    %v1136 = vsel %vm1125, %v1110, %v1046
    %v1137 = vsel %vm1125, %v1111, %v1048
    %v1138 = vsel %vm1125, %v1112, %v1050
    %v1139 = vsel %vm1125, %v1113, %v1052
    %v1140 = vsel %vm1125, %v1114, %v1054
    %v1141 = vsel %vm1125, %v1115, %v1056
    %v1142 = vsel %vm1125, %v1116, %v1058
    %v1143 = vsel %vm1125, %v1117, %v1060
    %v1144 = vsel %vm1125, %v1118, %v1062
    %v1145 = vsel %vm1125, %v1119, %v1064
    %v1146 = vsel %vm1125, %v1120, %v1066
    %v1147 = vsel %vm1125, %v1121, %v1068
    %v1148 = vsel %vm1125, %v1122, %v1070
    %v1149 = vsel %vm1125, %v1123, %v1072
    %v1150 = vsel %vm1125, %v1124, %v1074
    %1151 = vst [vmem:[#allocation2] sm:$0xff] %v1126
    %1152 = vst [vmem:[#allocation2 + $0x8] sm:$0xff] %v1127
    %1153 = vst [vmem:[#allocation2 + $0x10] sm:$0xff] %v1128
    %1154 = vst [vmem:[#allocation2 + $0x18] sm:$0xff] %v1129
    %1155 = vst [vmem:[#allocation2 + $0x20] sm:$0xff] %v1130
    %1156 = vst [vmem:[#allocation2 + $0x28] sm:$0xff] %v1131
    %1157 = vst [vmem:[#allocation2 + $0x30] sm:$0xff] %v1132
    %1158 = vst [vmem:[#allocation2 + $0x38] sm:$0xff] %v1133
    %1159 = vst [vmem:[#allocation2 + $0x40] sm:$0xff] %v1134
    %1160 = vst [vmem:[#allocation2 + $0x48] sm:$0xff] %v1135
    %1161 = vst [vmem:[#allocation2 + $0x50] sm:$0xff] %v1136
    %1162 = vst [vmem:[#allocation2 + $0x58] sm:$0xff] %v1137
    %1163 = vst [vmem:[#allocation2 + $0x60] sm:$0xff] %v1138
    %1164 = vst [vmem:[#allocation2 + $0x68] sm:$0xff] %v1139
    %1165 = vst [vmem:[#allocation2 + $0x70] sm:$0xff] %v1140
    %1166 = vst [vmem:[#allocation2 + $0x78] sm:$0xff] %v1141
    %1167 = vst [vmem:[#allocation2 + $0x80] sm:$0xff] %v1142
    %1168 = vst [vmem:[#allocation2 + $0x88] sm:$0xff] %v1143
    %1169 = vst [vmem:[#allocation2 + $0x90] sm:$0xff] %v1144
    %1170 = vst [vmem:[#allocation2 + $0x98] sm:$0xff] %v1145
    %1171 = vst [vmem:[#allocation2 + $0xa0] sm:$0xff] %v1146
    %1172 = vst [vmem:[#allocation2 + $0xa8] sm:$0xff] %v1147
    %1173 = vst [vmem:[#allocation2 + $0xb0] sm:$0xff] %v1148
    %1174 = vst [vmem:[#allocation2 + $0xb8] sm:$0xff] %v1149
    %1175 = vst [vmem:[#allocation2 + $0xc0] sm:$0xff] %v1150
    // Predicated region
    $region26: #{densenet_forward.1} parent=1 // pred_check
      _
    $region27: #{densenet_forward.1} parent=1 // pred_check_branch
      %1177 = sbr.rel (0) target = $region29
    $region28: #{densenet_forward.1} parent=1 // pred_region
      %s1179 = ssub.s32 3200, 3200
      %1180 = vsyncadd [#allocation3], %s1179
      %s1181 = sshll.u32 [#allocation2], 4
      %s1182 = int_to_ptr.vmem [resolvable:$true] %s1181
      %1187 = dma.vmem_to_hbm [thread:$0]  %s1182, 3200, %s6, [#allocation3], 128, 128, 8
    $region29: #{densenet_forward.1} parent=1 // pred_fallthru
      _
    // Predicated region
    $region30: #{densenet_forward.1} parent=1 // pred_check
      _
    $region31: #{densenet_forward.1} parent=1 // pred_check_branch
      %1189 = sbr.rel (0) target = $region33
    $region32: #{densenet_forward.1} parent=1 // pred_region
      %1190 = dma.done [#allocation3], 3200
    $region33: #{densenet_forward.1} parent=1 // pred_fallthru
      _
    %1191 = vsyncpa [#allocation3], 1

</llo_original>
